<compile_context>
chip_gen: v7x
topology: tpu7x:2x2x1
jax: 0.10.0
libtpu: 0.0.40
codegen_flags: <defaults>
</compile_context>

<pallas_src>
import jax
import jax.numpy as jnp
from jax.experimental import pallas as pl
from jax.experimental.pallas import tpu as pltpu


# ----------------------------------------------------------------------------
# Pallas kernel: lane-dense matmuls for one tile of batch elements.
# ----------------------------------------------------------------------------
def _periodic_const_kernel(w2_ref, const_ref, out_ref):
    # w2_ref:    (TB, R^2, R^2) VMEM -- per-batch Kronecker weights [(p,q),(i,j)]
    # const_ref: (C,  R^2)      VMEM -- [c,(p,q)], resident across the whole grid
    # out_ref:   (TB, C, R^2)   VMEM -- [c,(i,j)], lane-dense stores (R^2 % 128 == 0)
    const2d = const_ref[...]
    for b in range(out_ref.shape[0]):          # static unroll over the batch tile
        out_ref[b] = jnp.dot(const2d, w2_ref[b],
                             preferred_element_type=jnp.float32)


def _choose_batch_tile(batch, rr, *, vmem_budget_bytes=8 << 20, min_grid_steps=2):
    """Largest divisor of `batch` whose double-buffered W2 block fits the VMEM
    budget, while (when B allows) keeping >= min_grid_steps grid steps so the
    'parallel' batch axis can still shard across TensorCores (v7x megacore)."""
    per_batch_bytes = 2 * rr * rr * 4          # double-buffered f32 W2 slab
    cap = max(1, vmem_budget_bytes // per_batch_bytes)
    if batch >= min_grid_steps:
        cap = min(cap, max(1, batch // min_grid_steps))
    cap = min(cap, batch)
    tb = 1
    for d in range(1, cap + 1):
        if batch % d == 0:
            tb = d
    return tb


def _sample_with_kron(w2, const2d):
    """w2: [B, R^2, R^2] f32; const2d: [C, R^2] f32 -> [B, C, R^2] f32."""
    B, RR, _ = w2.shape
    C = const2d.shape[0]
    TB = _choose_batch_tile(B, RR)
    return pl.pallas_call(
        _periodic_const_kernel,
        out_shape=jax.ShapeDtypeStruct((B, C, RR), jnp.float32),
        grid_spec=pl.GridSpec(
            grid=(B // TB,),
            in_specs=[
                pl.BlockSpec((TB, RR, RR), lambda i: (i, 0, 0)),  # W2 (per batch tile)
                pl.BlockSpec((C, RR), lambda i: (0, 0)),          # const: fetched once
            ],
            out_specs=pl.BlockSpec((TB, C, RR), lambda i: (i, 0, 0)),
        ),
        compiler_params=pltpu.CompilerParams(
            dimension_semantics=("parallel",)),
    )(w2, const2d)


# ----------------------------------------------------------------------------
# Glue: separable bilinear interpolation matrices (plain JAX, tiny).
# ----------------------------------------------------------------------------
def _interp_matrix(pix, n_in, fold_mod=None):
    """pix: [B, n_out] continuous pixel index in [0, n_in-1].
    Returns [B, n_out, n_cols] bilinear weight matrix.  The out-of-range
    neighbor (grid_sample zero-padding semantics) always carries exactly zero
    weight here, so clamping it before the optional periodic fold is exact."""
    i0f = jnp.floor(pix)
    w1 = pix - i0f
    w0 = 1.0 - w1
    i0 = jnp.clip(i0f.astype(jnp.int32), 0, n_in - 1)
    i1 = jnp.clip(i0 + 1, 0, n_in - 1)
    if fold_mod is not None:
        i0 = i0 % fold_mod
        i1 = i1 % fold_mod
        n_cols = fold_mod
    else:
        n_cols = n_in
    oh0 = jax.nn.one_hot(i0, n_cols, dtype=jnp.float32)
    oh1 = jax.nn.one_hot(i1, n_cols, dtype=jnp.float32)
    return w0[..., None] * oh0 + w1[..., None] * oh1


def _build_weight_matrices(shifts, R):
    """shifts: [B, 2] in [-1, 1] -> (Wy [B,R,R], Wx [B,R,R]) f32."""
    shifts = shifts.astype(jnp.float32)
    row = jnp.linspace(-1.0, 1.0, R, dtype=jnp.float32)

    # x-coordinate over the 3x-tiled width (W_in = 3R), folded periodically.
    gx = (row[None, :] + 2.0 * shifts[:, 0:1]) / 3.0                 # [B, R]
    ix = (gx + 1.0) * 0.5 * (3 * R - 1)                              # [0, 3R-1]
    wx = _interp_matrix(ix, 3 * R, fold_mod=R)                       # [B, R, R]

    # y-coordinate over height (H_in = R); generate_coords flips y.
    gy = (row[::-1][None, :] + 2.0 * shifts[:, 1:2]) / 3.0           # [B, R]
    iy = (gy + 1.0) * 0.5 * (R - 1)                                  # [0, R-1]
    wy = _interp_matrix(iy, R)                                       # [B, R, R]
    return wy, wx


def periodic_const_input_forward(const_input, batch_size, shifts=None):
    """JAX/Pallas equivalent of PeriodicConstInput.forward.

    const_input: [C, R, R] float32
    shifts:      optional [B, 2] float32 in [-1, 1]
    returns:     [B, C, R, R] float32   (NCHW, like PyTorch)
    """
    C, R, _ = const_input.shape
    if shifts is None:
        # Pure broadcast; nothing to compute.
        return jnp.broadcast_to(const_input[None], (batch_size, C, R, R))

    # TODO(synk): the PyTorch module's runtime value asserts on shifts
    # (min/max in [-1,1] via host-side .item()) have no in-kernel analog.
    B = batch_size
    wy, wx = _build_weight_matrices(shifts, R)

    # Kronecker weights: w2[b, (p,q), (i,j)] = Wy[b,i,p] * Wx[b,j,q].
    # Pre-laid-out so the kernel needs no transpose/reshape.
    w2 = jnp.einsum("bip,bjq->bpqij", wy, wx).reshape(B, R * R, R * R)
    const2d = const_input.astype(jnp.float32).reshape(C, R * R)

    out_slab = _sample_with_kron(w2, const2d)                        # [B, C, R^2]
    return out_slab.reshape(B, C, R, R)


# ----------------------------------------------------------------------------
# Demo / self-check
# ----------------------------------------------------------------------------
if __name__ == "__main__":
    key = jax.random.PRNGKey(0)
    k_const, k_shift = jax.random.split(key)

    B, C, R = 2, 4, 16
    # Deterministic "parameter" (torch.randn equivalent), shape [C, R, R].
    const_input = jax.random.normal(k_const, (C, R, R), dtype=jnp.float32)
    # Shifts in [-1, 1], shape [B, 2].
    shifts = jax.random.uniform(k_shift, (B, 2), minval=-1.0, maxval=1.0,
                                dtype=jnp.float32)

    out = periodic_const_input_forward(const_input, B, shifts)
    out = jax.block_until_ready(out)
    assert out.shape == (B, C, R, R), out.shape

    # Pure-JAX reference of the same separable bilinear sampling, to sanity
    # check the Pallas matmul kernel and the Kronecker packing.
    wy_ref, wx_ref = _build_weight_matrices(shifts, R)
    ref = jnp.einsum("bip,cpq,bjq->bcij", wy_ref, const_input, wx_ref)
    assert jnp.allclose(out, ref, atol=1e-4, rtol=1e-4)

    # Also exercise the shifts=None path (plain broadcast, no sampling).
    out_none = jax.block_until_ready(
        periodic_const_input_forward(const_input, B, None))
    assert out_none.shape == (B, C, R, R)
    assert jnp.allclose(out_none[0], const_input)

    print("KERNEL_OK")
</pallas_src>

<mosaic_0001>
module attributes {stable_mosaic.version = 11 : i64} {
  func.func @_periodic_const_kernel(%arg0: i32, %arg1: memref<1x256x256xf32, #tpu.memory_space<vmem>>, %arg2: memref<4x256xf32, #tpu.memory_space<vmem>>, %arg3: memref<1x4x256xf32, #tpu.memory_space<vmem>>) attributes {dimension_semantics = [#tpu.dimension_semantics<parallel>], iteration_bounds = array<i64: 2>, scalar_prefetch = 0 : i64, scratch_operands = 0 : i64, tpu.core_type = #tpu.core_type<tc>, window_params = [{transform_indices = @transform_0, window_bounds = array<i64: 1, 256, 256>}, {pipeline_mode = #tpu.pipeline_mode<synchronous>, transform_indices = @transform_1, window_bounds = array<i64: 4, 256>}, {transform_indices = @transform_2, window_bounds = array<i64: 1, 4, 256>}]} {
    %c0 = arith.constant 0 : index
    %c0_0 = arith.constant 0 : index
    %0 = vector.load %arg2[%c0, %c0_0] : memref<4x256xf32, #tpu.memory_space<vmem>>, vector<4x256xf32>
    %c0_1 = arith.constant 0 : index
    %c0_2 = arith.constant 0 : index
    %c0_3 = arith.constant 0 : index
    %1 = vector.load %arg1[%c0_1, %c0_2, %c0_3] : memref<1x256x256xf32, #tpu.memory_space<vmem>>, vector<1x256x256xf32>
    %2 = vector.shape_cast %1 : vector<1x256x256xf32> to vector<256x256xf32>
    %cst = arith.constant dense<0.000000e+00> : vector<4x256xf32>
    %3 = tpu.matmul %0, %2, %cst {dimension_numbers = #tpu.dot_dimension_numbers<[1], [0], [0], [1], [0, 0, 1, 1], [], []>} : vector<4x256xf32>, vector<256x256xf32>, vector<4x256xf32> -> vector<4x256xf32>
    %c0_4 = arith.constant 0 : index
    %c0_5 = arith.constant 0 : index
    %c0_6 = arith.constant 0 : index
    %4 = vector.load %arg3[%c0_4, %c0_5, %c0_6] : memref<1x4x256xf32, #tpu.memory_space<vmem>>, vector<1x4x256xf32>
    %5 = vector.shape_cast %4 : vector<1x4x256xf32> to vector<4x256xf32>
    %6 = vector.shape_cast %3 : vector<4x256xf32> to vector<1x4x256xf32>
    tpu.vector_store %arg3[%c0_4, %c0_5, %c0_6], %6 {strides = array<i32>} : memref<1x4x256xf32, #tpu.memory_space<vmem>>, vector<1x4x256xf32>,
    return
  }
  func.func @transform_0(%arg0: i32) -> (i32, i32, i32) {
    %c0_i32 = arith.constant 0 : i32
    %c0_i32_0 = arith.constant 0 : i32
    %c0_i32_1 = arith.constant 0 : i32
    return %arg0, %c0_i32, %c0_i32_0 : i32, i32, i32
  }
  func.func @transform_1(%arg0: i32) -> (i32, i32) {
    %c0_i32 = arith.constant 0 : i32
    %c0_i32_0 = arith.constant 0 : i32
    %c0_i32_1 = arith.constant 0 : i32
    return %c0_i32, %c0_i32_0 : i32, i32
  }
  func.func @transform_2(%arg0: i32) -> (i32, i32, i32) {
    %c0_i32 = arith.constant 0 : i32
    %c0_i32_0 = arith.constant 0 : i32
    %c0_i32_1 = arith.constant 0 : i32
    return %arg0, %c0_i32, %c0_i32_0 : i32, i32, i32
  }
}

</mosaic_0001>

<llo_original>
// kernel: tpu_custom_call.1
$region0: #{tpu_custom_call.1}
  #allocation0 [shape = 'u32[]', space=smem, size = 0x4, offset = 0x4, fixed_abs, tag = 'smem constant byte address 0x4 - core index']
  #allocation1 [shape = 'u32[144,128]{1,0:T(1,128)}', space=vmem, size = 0x12000, scoped, tag = 'internal scratch']
  %s0 = inlined_call_operand.hbm [shape: f32[2,256,256], index: 0, kind: input, shape index: {}]
  %s1 = inlined_call_operand.hbm [shape: f32[4,256], index: 1, kind: input, shape index: {}]
  %s2 = inlined_call_operand.hbm [shape: f32[2,4,256], index: 2, kind: output, shape index: {}]
  %s3 = sld [smem:[#allocation0]]
  $region49: #{tpu_custom_call.1} parent=0
    _
  %s5 = ssub.s32 1, %s3
  %s6 = scalar_select 0, %s5, %s3
  $region1: #{tpu_custom_call.1} parent=0
    #allocation2 [shape = 'u8[524288]{0}', space=vmem, size = 0x80000, scoped, tag = 'input window, operand 0']
    #allocation3 [shape = 's32[2]{0}', space=sflag, size = 0x8, scoped, tag = 'scoped memory for tpu_custom_call.1']
    #allocation4 [shape = 's32[2]{0}', space=sflag, size = 0x8, scoped, tag = 'scoped memory for tpu_custom_call.1']
    #allocation5 [shape = 'u8[4096]{0}', space=vmem, size = 0x1000, scoped, tag = 'input window, operand 1, single buffered']
    #allocation6 [shape = 's32[1]{0}', space=sflag, size = 0x4, scoped, tag = 'scoped memory for tpu_custom_call.1']
    #allocation7 [shape = 'u8[8192]{0}', space=vmem, size = 0x2000, scoped, tag = 'output window, operand 0']
    %7 = vsyncpa [#allocation3], 0
    %s8 = scalar_lea.sflag [#allocation3], 1
    %9 = vsyncpa %s8, 0
    %10 = vsyncpa [#allocation6], 0
    %11 = vsyncpa [#allocation4], 0
    %s12 = scalar_lea.sflag [#allocation4], 1
    %13 = vsyncpa %s12, 0
    loop: start=0, step=1, limit=4
    $region2: #{tpu_custom_call.1} parent=1 // loop_pre_header
      _
    $region3: #{tpu_custom_call.1} parent=1 // loop_header
      %s15 = sphi 0, %s19
      %p16 = scmp.ge.s32.totalorder %s15, 4
      %s25 = sphi 0, %s27
      %s28 = sphi 0, %s25
      %s29 = sphi 0, %s28
      %s45 = sphi 0, %s29
      %s49 = sphi 0, %s49
      %s51 = sphi 0, %s49
      %s52 = sphi 0, %s51
      %s66 = sphi 0, %s52
      %s72 = sphi 0, %s74
      %s75 = sphi 0, %s72
      %s76 = sphi 0, %s75
      %s92 = sphi 0, %s76
    $region4: #{tpu_custom_call.1} parent=1 // loop_header_branch
      %18 = sbr.rel (%p16) target = $region8
    $region5: #{tpu_custom_call.1} parent=1 // loop_body
      %s20 = ssub.s32 %s15, 1
      %s21 = ssub.s32 %s15, 2
      %s22 = sadd.s32 %s15, 1
      %s23 = ssub.s32 %s15, %s22
      %p24 = scmp.eq.s32.totalorder %s23, 0
      %s26 = sadd.s32 %s25, 1
      %s27 = scalar_select %p24, %s25, %s26
      %p30 = pneg %p24
      %p31 = scmp.eq.s32.totalorder %s15, 1
      %p32 = por %p30, %p31
      %p33 = scmp.ne.s32.totalorder %s25, %s28
      %p34 = scmp.eq.s32.totalorder %s15, 0
      %p35 = por %p33, %p34
      %p36 = scmp.ne.s32.totalorder %s25, %s28
      %p37 = scmp.eq.s32.totalorder %s20, 1
      %p38 = por %p36, %p37
      %p39 = scmp.ne.s32.totalorder %s28, %s29
      %p40 = scmp.eq.s32.totalorder %s20, 0
      %p41 = por %p39, %p40
      %p42 = scmp.ne.s32.totalorder %s28, %s29
      %p43 = scmp.eq.s32.totalorder %s21, 1
      %p44 = por %p42, %p43
      %p46 = scmp.ne.s32.totalorder %s29, %s45
      %p47 = scmp.eq.s32.totalorder %s21, 0
      %p48 = por %p46, %p47
      %s50 = sadd.s32 %s49, 1
      %p53 = scmp.eq.s32.totalorder %s15, 1
      %p54 = scmp.ne.s32.totalorder %s49, %s51
      %p55 = scmp.eq.s32.totalorder %s15, 0
      %p56 = por %p54, %p55
      %p57 = scmp.ne.s32.totalorder %s49, %s51
      %p58 = scmp.eq.s32.totalorder %s20, 1
      %p59 = por %p57, %p58
      %p60 = scmp.ne.s32.totalorder %s51, %s52
      %p61 = scmp.eq.s32.totalorder %s20, 0
      %p62 = por %p60, %p61
      %p63 = scmp.ne.s32.totalorder %s51, %s52
      %p64 = scmp.eq.s32.totalorder %s21, 1
      %p65 = por %p63, %p64
      %p67 = scmp.ne.s32.totalorder %s52, %s66
      %p68 = scmp.eq.s32.totalorder %s21, 0
      %p69 = por %p67, %p68
      %s70 = ssub.s32 %s15, %s22
      %p71 = scmp.eq.s32.totalorder %s70, 0
      %s73 = sadd.s32 %s72, 1
      %s74 = scalar_select %p71, %s72, %s73
      %p77 = pneg %p71
      %p78 = scmp.eq.s32.totalorder %s15, 1
      %p79 = por %p77, %p78
      %p80 = scmp.ne.s32.totalorder %s72, %s75
      %p81 = scmp.eq.s32.totalorder %s15, 0
      %p82 = por %p80, %p81
      %p83 = scmp.ne.s32.totalorder %s72, %s75
      %p84 = scmp.eq.s32.totalorder %s20, 1
      %p85 = por %p83, %p84
      %p86 = scmp.ne.s32.totalorder %s75, %s76
      %p87 = scmp.eq.s32.totalorder %s20, 0
      %p88 = por %p86, %p87
      %p89 = scmp.ne.s32.totalorder %s75, %s76
      %p90 = scmp.eq.s32.totalorder %s21, 1
      %p91 = por %p89, %p90
      %p93 = scmp.ne.s32.totalorder %s76, %s92
      %p94 = scmp.eq.s32.totalorder %s21, 0
      %p95 = por %p93, %p94
      %p96 = scmp.le.s32.totalorder 1, %s15
      %p97 = scmp.lt.s32.totalorder %s15, 3
      %p98 = pnand %p96, %p97
      %p99 = pneg %p98
      // Predicated region
      $region9: #{tpu_custom_call.1} parent=5 // pred_check
        _
      $region10: #{tpu_custom_call.1} parent=5 // pred_check_branch
        %101 = sbr.rel (%p98) target = $region12
      $region11: #{tpu_custom_call.1} parent=5 // pred_region
        %s102 = ssub.s32 %s15, 1
        // Predicated region
        $region13: #{tpu_custom_call.1} parent=11 // pred_check
          %p103 = pneg %p62
        $region14: #{tpu_custom_call.1} parent=11 // pred_check_branch
          %105 = sbr.rel (%p103) target = $region16
        $region15: #{tpu_custom_call.1} parent=11 // pred_region
          %s107 = ssub.s32 128, 128
          %108 = vsyncadd [#allocation6], %s107
          %s110 = sshll.u32 [#allocation5], 4
          %s111 = int_to_ptr.vmem [resolvable:$true] %s110
          %113 = dma.hbm_to_vmem [thread:$0]  %s1, 128, %s111, [#allocation6]
        $region16: #{tpu_custom_call.1} parent=11 // pred_fallthru
          _
      $region12: #{tpu_custom_call.1} parent=5 // pred_fallthru
        _
      %p114 = scmp.lt.s32.totalorder %s15, 2
      // Predicated region
      $region17: #{tpu_custom_call.1} parent=5 // pred_check
        %p115 = pneg %p114
      $region18: #{tpu_custom_call.1} parent=5 // pred_check_branch
        %117 = sbr.rel (%p115) target = $region20
      $region19: #{tpu_custom_call.1} parent=5 // pred_region
        // Predicated region
        $region21: #{tpu_custom_call.1} parent=19 // pred_check
          %p118 = pneg %p35
        $region22: #{tpu_custom_call.1} parent=19 // pred_check_branch
          %120 = sbr.rel (%p118) target = $region24
        $region23: #{tpu_custom_call.1} parent=19 // pred_region
          %s121 = sand.u32 %s25, 1
          %s122 = scalar_lea.sflag [#allocation3], %s121
          %s123 = sand.u32 %s25, 1
          %s124 = smul.addr %s123, 512
          %s125 = scalar_lea.vmem [#allocation2], %s124
          %s127 = ssub.s32 8192, 8192
          %128 = vsyncadd %s122, %s127
          %s129 = smul.addr %s15, 64
          %s130 = smul.addr %s129, 128
          %s131 = scalar_lea.hbm %s0, %s130
          %s132 = sshll.u32 %s125, 4
          %s133 = int_to_ptr.vmem [resolvable:$true] %s132
          %138 = dma.hbm_to_vmem [thread:$0]  %s131, 8192, %s133, %s122, 256, 256, 16
        $region24: #{tpu_custom_call.1} parent=19 // pred_fallthru
          _
      $region20: #{tpu_custom_call.1} parent=5 // pred_fallthru
        _
      %p139 = scmp.le.s32.totalorder 1, %s15
      %p140 = scmp.lt.s32.totalorder %s15, 3
      %p141 = pnand %p139, %p140
      %p142 = pneg %p141
      // Predicated region
      $region25: #{tpu_custom_call.1} parent=5 // pred_check
        _
      $region26: #{tpu_custom_call.1} parent=5 // pred_check_branch
        %144 = sbr.rel (%p141) target = $region28
      $region27: #{tpu_custom_call.1} parent=5 // pred_region
        %s145 = ssub.s32 %s15, 1
        %s146 = sand.u32 %s28, 1
        %s147 = scalar_lea.sflag [#allocation3], %s146
        %s148 = sand.u32 %s28, 1
        %s149 = smul.addr %s148, 512
        %s150 = scalar_lea.vmem [#allocation2], %s149
        // Predicated region
        $region29: #{tpu_custom_call.1} parent=27 // pred_check
          %p151 = pneg %p41
        $region30: #{tpu_custom_call.1} parent=27 // pred_check_branch
          %153 = sbr.rel (%p151) target = $region32
        $region31: #{tpu_custom_call.1} parent=27 // pred_region
          %154 = dma.done %s147, 8192
        $region32: #{tpu_custom_call.1} parent=27 // pred_fallthru
          _
        // Predicated region
        $region33: #{tpu_custom_call.1} parent=27 // pred_check
          %p155 = pneg %p62
        $region34: #{tpu_custom_call.1} parent=27 // pred_check_branch
          %157 = sbr.rel (%p155) target = $region36
        $region35: #{tpu_custom_call.1} parent=27 // pred_region
          %158 = dma.done [#allocation6], 128
        $region36: #{tpu_custom_call.1} parent=27 // pred_fallthru
          _
        %s159 = sand.u32 %s28, 1
        %s160 = scalar_lea.sflag [#allocation3], %s159
        %s161 = sand.u32 %s28, 1
        %s162 = smul.addr %s161, 512
        %s163 = scalar_lea.vmem [#allocation2], %s162
        %p164 = pneg %p41
        %p165 = pneg %p38
        %p166 = pneg %p62
        %p167 = pneg %p59
        %p168 = pneg %p88
        %p169 = pneg %p85
        %s170 = sand.u32 %s75, 1
        %s171 = scalar_lea.sflag [#allocation4], %s170
        %s172 = sand.u32 %s75, 1
        %s173 = smul.addr %s172, 8
        %s174 = scalar_lea.vmem [#allocation7], %s173
        %v175 = vld [vmem:[#allocation5] sm:$0xff]
        %v176 = vld [vmem:[%s150] sm:$0xff]
        %v177 = vld [vmem:[%s150 + $0x8] sm:$0xff]
        %v178 = vld [vmem:[%s150 + $0x10] sm:$0xff]
        %v179 = vld [vmem:[%s150 + $0x18] sm:$0xff]
        %v180 = vld [vmem:[%s150 + $0x20] sm:$0xff]
        %v181 = vld [vmem:[%s150 + $0x28] sm:$0xff]
        %v182 = vld [vmem:[%s150 + $0x30] sm:$0xff]
        %v183 = vld [vmem:[%s150 + $0x38] sm:$0xff]
        %v184 = vld [vmem:[%s150 + $0x40] sm:$0xff]
        %v185 = vld [vmem:[%s150 + $0x48] sm:$0xff]
        %v186 = vld [vmem:[%s150 + $0x50] sm:$0xff]
        %v187 = vld [vmem:[%s150 + $0x58] sm:$0xff]
        %v188 = vld [vmem:[%s150 + $0x60] sm:$0xff]
        %v189 = vld [vmem:[%s150 + $0x68] sm:$0xff]
        %v190 = vld [vmem:[%s150 + $0x70] sm:$0xff]
        %v191 = vld [vmem:[%s150 + $0x78] sm:$0xff]
        %v192 = vld [vmem:[%s150 + $0x80] sm:$0xff]
        %v193 = vld [vmem:[%s150 + $0x88] sm:$0xff]
        %v194 = vld [vmem:[%s150 + $0x90] sm:$0xff]
        %v195 = vld [vmem:[%s150 + $0x98] sm:$0xff]
        %v196 = vld [vmem:[%s150 + $0xa0] sm:$0xff]
        %v197 = vld [vmem:[%s150 + $0xa8] sm:$0xff]
        %v198 = vld [vmem:[%s150 + $0xb0] sm:$0xff]
        %v199 = vld [vmem:[%s150 + $0xb8] sm:$0xff]
        %v200 = vld [vmem:[%s150 + $0xc0] sm:$0xff]
        %v201 = vld [vmem:[%s150 + $0xc8] sm:$0xff]
        %v202 = vld [vmem:[%s150 + $0xd0] sm:$0xff]
        %v203 = vld [vmem:[%s150 + $0xd8] sm:$0xff]
        %v204 = vld [vmem:[%s150 + $0xe0] sm:$0xff]
        %v205 = vld [vmem:[%s150 + $0xe8] sm:$0xff]
        %v206 = vld [vmem:[%s150 + $0xf0] sm:$0xff]
        %v207 = vld [vmem:[%s150 + $0xf8] sm:$0xff]
        %v208 = vld [vmem:[%s150 + $0x100] sm:$0xff]
        %v209 = vld [vmem:[%s150 + $0x108] sm:$0xff]
        %v210 = vld [vmem:[%s150 + $0x110] sm:$0xff]
        %v211 = vld [vmem:[%s150 + $0x118] sm:$0xff]
        %v212 = vld [vmem:[%s150 + $0x120] sm:$0xff]
        %v213 = vld [vmem:[%s150 + $0x128] sm:$0xff]
        %v214 = vld [vmem:[%s150 + $0x130] sm:$0xff]
        %v215 = vld [vmem:[%s150 + $0x138] sm:$0xff]
        %v216 = vld [vmem:[%s150 + $0x140] sm:$0xff]
        %v217 = vld [vmem:[%s150 + $0x148] sm:$0xff]
        %v218 = vld [vmem:[%s150 + $0x150] sm:$0xff]
        %v219 = vld [vmem:[%s150 + $0x158] sm:$0xff]
        %v220 = vld [vmem:[%s150 + $0x160] sm:$0xff]
        %v221 = vld [vmem:[%s150 + $0x168] sm:$0xff]
        %v222 = vld [vmem:[%s150 + $0x170] sm:$0xff]
        %v223 = vld [vmem:[%s150 + $0x178] sm:$0xff]
        %v224 = vld [vmem:[%s150 + $0x180] sm:$0xff]
        %v225 = vld [vmem:[%s150 + $0x188] sm:$0xff]
        %v226 = vld [vmem:[%s150 + $0x190] sm:$0xff]
        %v227 = vld [vmem:[%s150 + $0x198] sm:$0xff]
        %v228 = vld [vmem:[%s150 + $0x1a0] sm:$0xff]
        %v229 = vld [vmem:[%s150 + $0x1a8] sm:$0xff]
        %v230 = vld [vmem:[%s150 + $0x1b0] sm:$0xff]
        %v231 = vld [vmem:[%s150 + $0x1b8] sm:$0xff]
        %v232 = vld [vmem:[%s150 + $0x1c0] sm:$0xff]
        %v233 = vld [vmem:[%s150 + $0x1c8] sm:$0xff]
        %v234 = vld [vmem:[%s150 + $0x1d0] sm:$0xff]
        %v235 = vld [vmem:[%s150 + $0x1d8] sm:$0xff]
        %v236 = vld [vmem:[%s150 + $0x1e0] sm:$0xff]
        %v237 = vld [vmem:[%s150 + $0x1e8] sm:$0xff]
        %v238 = vld [vmem:[%s150 + $0x1f0] sm:$0xff]
        %v239 = vld [vmem:[%s150 + $0x1f8] sm:$0xff]
        %v241 = vcombine.high %v175, %v175
        %243 = vmatprep.subr.mxu0 %v177
        %244 = vmatpush1.msra.mxu0 %v176
        %245 = vmatprep.subr.mxu0 %v179
        %246 = vmatpush1.msra.mxu0 %v178
        %247 = vmatprep.subr.mxu0 %v181
        %248 = vmatpush1.msra.mxu0 %v180
        %249 = vmatprep.subr.mxu0 %v183
        %250 = vmatpush1.msra.mxu0 %v182
        %251 = vmatprep.subr.mxu0 %v185
        %252 = vmatpush1.msra.mxu0 %v184
        %253 = vmatprep.subr.mxu0 %v187
        %254 = vmatpush1.msra.mxu0 %v186
        %255 = vmatprep.subr.mxu0 %v189
        %256 = vmatpush1.msra.mxu0 %v188
        %257 = vmatprep.subr.mxu0 %v191
        %258 = vmatpush1.msra.mxu0 %v190
        %259 = vmatprep.subr.mxu0 %v193
        %260 = vmatpush1.msra.mxu0 %v192
        %261 = vmatprep.subr.mxu0 %v195
        %262 = vmatpush1.msra.mxu0 %v194
        %263 = vmatprep.subr.mxu0 %v197
        %264 = vmatpush1.msra.mxu0 %v196
        %265 = vmatprep.subr.mxu0 %v199
        %266 = vmatpush1.msra.mxu0 %v198
        %267 = vmatprep.subr.mxu0 %v201
        %268 = vmatpush1.msra.mxu0 %v200
        %269 = vmatprep.subr.mxu0 %v203
        %270 = vmatpush1.msra.mxu0 %v202
        %271 = vmatprep.subr.mxu0 %v205
        %272 = vmatpush1.msra.mxu0 %v204
        %273 = vmatprep.subr.mxu0 %v207
        %274 = vmatpush1.msra.mxu0 %v206
        %275 = vmatprep.subr.mxu0 %v209
        %276 = vmatpush1.msra.mxu0 %v208
        %277 = vmatprep.subr.mxu0 %v211
        %278 = vmatpush1.msra.mxu0 %v210
        %279 = vmatprep.subr.mxu0 %v213
        %280 = vmatpush1.msra.mxu0 %v212
        %281 = vmatprep.subr.mxu0 %v215
        %282 = vmatpush1.msra.mxu0 %v214
        %283 = vmatprep.subr.mxu0 %v217
        %284 = vmatpush1.msra.mxu0 %v216
        %285 = vmatprep.subr.mxu0 %v219
        %286 = vmatpush1.msra.mxu0 %v218
        %287 = vmatprep.subr.mxu0 %v221
        %288 = vmatpush1.msra.mxu0 %v220
        %289 = vmatprep.subr.mxu0 %v223
        %290 = vmatpush1.msra.mxu0 %v222
        %291 = vmatprep.subr.mxu0 %v225
        %292 = vmatpush1.msra.mxu0 %v224
        %293 = vmatprep.subr.mxu0 %v227
        %294 = vmatpush1.msra.mxu0 %v226
        %295 = vmatprep.subr.mxu0 %v229
        %296 = vmatpush1.msra.mxu0 %v228
        %297 = vmatprep.subr.mxu0 %v231
        %298 = vmatpush1.msra.mxu0 %v230
        %299 = vmatprep.subr.mxu0 %v233
        %300 = vmatpush1.msra.mxu0 %v232
        %301 = vmatprep.subr.mxu0 %v235
        %302 = vmatpush1.msra.mxu0 %v234
        %303 = vmatprep.subr.mxu0 %v237
        %304 = vmatpush1.msra.mxu0 %v236
        %305 = vmatprep.subr.mxu0 %v239
        %306 = vmatpush1.msra.mxu0 %v238
        %307 = vmatprep.mubr.f32.mxu0 %v241
        %308 = vmatmul.mubr.f32.gmra.mrb[0].mxu0 %v175
        %v309 = vpop.f32.mrb[0].mxu0
        %v310 = vadd.f32 0.0, %v309
        %v311 = vpop.f32.mrb[0].mxu0
        %v312 = vadd.f32 0.0, %v311
        %313 = vdwg.mxu0
        %v316 = vcombine.low %v310, %v312
        %318 = vst [vmem:[%s174] sm:$0xff] %v316
        %s319 = sand.u32 %s75, 1
        %s320 = scalar_lea.sflag [#allocation4], %s319
        %s321 = sand.u32 %s75, 1
        %s322 = smul.addr %s321, 8
        %s323 = scalar_lea.vmem [#allocation7], %s322
        // Predicated region
        $region37: #{tpu_custom_call.1} parent=27 // pred_check
          %p324 = pneg %p85
        $region38: #{tpu_custom_call.1} parent=27 // pred_check_branch
          %326 = sbr.rel (%p324) target = $region40
        $region39: #{tpu_custom_call.1} parent=27 // pred_region
          %s328 = ssub.s32 128, 128
          %329 = vsyncadd %s320, %s328
          %s330 = smul.addr %s20, 2
          %s331 = smul.addr %s330, 64
          %s332 = scalar_lea.hbm %s2, %s331
          %s334 = sshll.u32 %s323, 4
          %s335 = int_to_ptr.vmem [resolvable:$true] %s334
          %337 = dma.vmem_to_hbm [thread:$0]  %s335, 128, %s332, %s320
        $region40: #{tpu_custom_call.1} parent=27 // pred_fallthru
          _
      $region28: #{tpu_custom_call.1} parent=5 // pred_fallthru
        _
      %p338 = scmp.le.s32.totalorder 2, %s15
      // Predicated region
      $region41: #{tpu_custom_call.1} parent=5 // pred_check
        %p339 = pneg %p338
      $region42: #{tpu_custom_call.1} parent=5 // pred_check_branch
        %341 = sbr.rel (%p339) target = $region44
      $region43: #{tpu_custom_call.1} parent=5 // pred_region
        %s342 = ssub.s32 %s15, 2
        // Predicated region
        $region45: #{tpu_custom_call.1} parent=43 // pred_check
          %p343 = pneg %p91
        $region46: #{tpu_custom_call.1} parent=43 // pred_check_branch
          %345 = sbr.rel (%p343) target = $region48
        $region47: #{tpu_custom_call.1} parent=43 // pred_region
          %s346 = sand.u32 %s76, 1
          %s347 = scalar_lea.sflag [#allocation4], %s346
          %s348 = sand.u32 %s76, 1
          %s349 = smul.addr %s348, 8
          %s350 = scalar_lea.vmem [#allocation7], %s349
          %351 = dma.done %s347, 128
        $region48: #{tpu_custom_call.1} parent=43 // pred_fallthru
          _
      $region44: #{tpu_custom_call.1} parent=5 // pred_fallthru
        _
    $region6: #{tpu_custom_call.1} parent=1 // loop_footer
      %s19 = sadd.s32 1, %s15
    $region7: #{tpu_custom_call.1} parent=1 // loop_footer_branch
      %14 = sbr.rel target = $region3
    $region8: #{tpu_custom_call.1} parent=1 // loop_exit
      _
    %352 = vsyncpa [#allocation3], 1
    %s353 = scalar_lea.sflag [#allocation3], 1
    %354 = vsyncpa %s353, 1
    %355 = vsyncpa [#allocation6], 1
    %356 = vsyncpa [#allocation4], 1
    %s357 = scalar_lea.sflag [#allocation4], 1
    %358 = vsyncpa %s357, 1

</llo_original>
